<compile_context>
chip_gen: v7x
topology: tpu7x:2x2x1
jax: 0.10.0
libtpu: 0.0.40
codegen_flags: <defaults>
</compile_context>

<pallas_src>
import jax
import jax.numpy as jnp
from jax.experimental import pallas as pl
from jax.experimental.pallas import tpu as pltpu

_MiB = 1024 * 1024
_LANE = 128


def _sublane_multiple(dtype) -> int:
    # f32 -> 8, bf16 -> 16, int8/fp8 -> 32 (sub-32-bit dtypes pack along sublanes).
    return max(8, 32 // jnp.dtype(dtype).itemsize)


def _round_up(x: int, m: int) -> int:
    return ((x + m - 1) // m) * m


def _vmem_budget_bytes() -> int:
    """Per-generation working-set budget with headroom under physical VMEM."""
    try:
        kind = jax.devices()[0].device_kind.lower()
    except Exception:
        kind = ""
    if "v7" in kind:
        return 24 * _MiB  # v7x: 64 MiB physical per TensorCore
    return 28 * _MiB      # v5e / v6e: 128 MiB physical


def _pca_encode_kernel(x_ref, w_ref, o_ref):
    # x_ref: (TB, HW)    flattened blur-kernel tile (streamed)
    # w_ref: (HW, L_pad) PCA projection matrix (VMEM-resident across steps)
    # o_ref: (TB, L_pad) projected codes (lane-dense stores)
    o_ref[...] = jnp.dot(
        x_ref[...], w_ref[...], preferred_element_type=jnp.float32
    ).astype(o_ref.dtype)


def _pca_encode_pallas(x, weight_p, L):
    """x: (B, HW) flattened kernels; weight_p: (HW, L_pad) padded weight."""
    B, HW = x.shape
    HW_w, L_pad = weight_p.shape
    assert HW_w == HW

    itemsize = jnp.dtype(x.dtype).itemsize
    sub = _sublane_multiple(x.dtype)

    # --- batch tile from VMEM budget ------------------------------------
    budget = _vmem_budget_bytes()
    # x + out rows are double-buffered by the pipeline; the resident weight is
    # conservatively counted twice (default Buffered(2)).
    resident = 2 * HW * L_pad * jnp.dtype(weight_p.dtype).itemsize
    bytes_per_row = 2 * (HW + L_pad) * itemsize
    tb = max(sub, (budget - resident) // bytes_per_row)
    tb = (tb // sub) * sub
    # Never larger than the (sublane-rounded) batch itself.
    tb = min(tb, _round_up(B, sub))
    # Keep >= 2 grid steps for medium/large B so both v7x TensorCores get work.
    if B > 2 * sub:
        tb = min(tb, _round_up(-(-B // 2), sub))
    TB = max(sub, tb)

    grid = (pl.cdiv(B, TB),)
    vmem_limit = min(int(budget + 8 * _MiB), 64 * _MiB)

    out = pl.pallas_call(
        _pca_encode_kernel,
        out_shape=jax.ShapeDtypeStruct((B, L_pad), x.dtype),
        grid_spec=pl.GridSpec(
            grid=grid,
            in_specs=[
                # Batch tile advances with the grid (ragged last block handled
                # by Pallas: padded reads, masked writes).
                pl.BlockSpec((TB, HW), lambda i: (i, 0)),
                # Constant block index -> weight stays resident, no re-DMA.
                pl.BlockSpec((HW, L_pad), lambda i: (0, 0)),
            ],
            out_specs=pl.BlockSpec((TB, L_pad), lambda i: (i, 0)),
        ),
        compiler_params=pltpu.CompilerParams(
            # Independent output tiles per grid step -> shardable across
            # TensorCores (v7x megacore).
            dimension_semantics=("parallel",),
            vmem_limit_bytes=vmem_limit,
        ),
    )(x, weight_p)

    # Strip lane padding only (no batch padding was ever introduced).
    return out[:, :L]


class PCAEncoder:
    """JAX/Pallas port of the PyTorch PCAEncoder module (forward only)."""

    # Below ~1 MiB of input, pallas_call fixed overhead dominates -> use XLA.
    _MIN_PALLAS_BYTES = 1 * _MiB

    def __init__(self, weight):
        weight = jnp.asarray(weight)
        self.weight = weight                       # (H*W, L) original buffer
        self.HW, self.L = weight.shape
        # Pad columns once at init (hoisted out of the per-call hot path).
        L_pad = max(_LANE, _round_up(self.L, _LANE))
        if L_pad != self.L:
            self.weight_p = (
                jnp.zeros((self.HW, L_pad), weight.dtype).at[:, : self.L].set(weight)
            )
        else:
            self.weight_p = weight

    def __call__(self, batch_kernel, use_pallas=None):
        B, H, W = batch_kernel.shape
        assert H * W == self.HW, "weight first dim must equal H*W"
        x = batch_kernel.reshape(B, self.HW)       # glue reshape in plain JAX
        if use_pallas is None:
            use_pallas = (
                B * self.HW * jnp.dtype(x.dtype).itemsize >= self._MIN_PALLAS_BYTES
            )
        if not use_pallas:
            # Tiny-batch fast path: a single XLA dot is as fast or faster.
            return x @ self.weight
        return _pca_encode_pallas(x, self.weight_p, self.L)


if __name__ == "__main__":
    key = jax.random.PRNGKey(0)
    k_x, k_w = jax.random.split(key)

    # Shapes consistent with the module: 16x16 blur kernels, 10 PCA components.
    B, H, W = 2, 16, 16
    L = 10

    batch_kernel = jax.random.normal(k_x, (B, H, W), dtype=jnp.float32)
    weight = jax.random.normal(k_w, (H * W, L), dtype=jnp.float32)

    enc = PCAEncoder(weight)
    ref = batch_kernel.reshape(B, H * W) @ weight  # torch.bmm semantics

    # Force the Pallas path so the kernel itself is exercised even at small B.
    out = jax.block_until_ready(enc(batch_kernel, use_pallas=True))
    assert out.shape == (B, L)
    assert jnp.allclose(out, ref, atol=1e-4, rtol=1e-4)

    # Auto-dispatch path (tiny batch -> XLA dot) must also match.
    out_auto = jax.block_until_ready(enc(batch_kernel))
    assert jnp.allclose(out_auto, ref, atol=1e-4, rtol=1e-4)

    print("KERNEL_OK")
</pallas_src>

<mosaic_0001>
module attributes {stable_mosaic.version = 11 : i64} {
  func.func @_pca_encode_kernel(%arg0: i32, %arg1: memref<8x256xf32, #tpu.memory_space<vmem>>, %arg2: memref<256x128xf32, #tpu.memory_space<vmem>>, %arg3: memref<8x128xf32, #tpu.memory_space<vmem>>) attributes {dimension_semantics = [#tpu.dimension_semantics<parallel>], iteration_bounds = array<i64: 1>, scalar_prefetch = 0 : i64, scratch_operands = 0 : i64, tpu.core_type = #tpu.core_type<tc>, window_params = [{transform_indices = @transform_0, window_bounds = array<i64: 8, 256>}, {pipeline_mode = #tpu.pipeline_mode<synchronous>, transform_indices = @transform_1, window_bounds = array<i64: 256, 128>}, {transform_indices = @transform_2, window_bounds = array<i64: 8, 128>}]} {
    %c0 = arith.constant 0 : index
    %c0_0 = arith.constant 0 : index
    %0 = vector.load %arg1[%c0, %c0_0] : memref<8x256xf32, #tpu.memory_space<vmem>>, vector<8x256xf32>
    %c0_1 = arith.constant 0 : index
    %c0_2 = arith.constant 0 : index
    %1 = vector.load %arg2[%c0_1, %c0_2] : memref<256x128xf32, #tpu.memory_space<vmem>>, vector<256x128xf32>
    %cst = arith.constant dense<0.000000e+00> : vector<8x128xf32>
    %2 = tpu.matmul %0, %1, %cst {dimension_numbers = #tpu.dot_dimension_numbers<[1], [0], [0], [1], [0, 0, 1, 1], [], []>} : vector<8x256xf32>, vector<256x128xf32>, vector<8x128xf32> -> vector<8x128xf32>
    %c0_3 = arith.constant 0 : index
    %c0_4 = arith.constant 0 : index
    %3 = vector.load %arg3[%c0_3, %c0_4] : memref<8x128xf32, #tpu.memory_space<vmem>>, vector<8x128xf32>
    tpu.vector_store %arg3[%c0_3, %c0_4], %2 {strides = array<i32>} : memref<8x128xf32, #tpu.memory_space<vmem>>, vector<8x128xf32>,
    return
  }
  func.func @transform_0(%arg0: i32) -> (i32, i32) {
    %c0_i32 = arith.constant 0 : i32
    %c0_i32_0 = arith.constant 0 : i32
    return %arg0, %c0_i32 : i32, i32
  }
  func.func @transform_1(%arg0: i32) -> (i32, i32) {
    %c0_i32 = arith.constant 0 : i32
    %c0_i32_0 = arith.constant 0 : i32
    %c0_i32_1 = arith.constant 0 : i32
    return %c0_i32, %c0_i32_0 : i32, i32
  }
  func.func @transform_2(%arg0: i32) -> (i32, i32) {
    %c0_i32 = arith.constant 0 : i32
    %c0_i32_0 = arith.constant 0 : i32
    return %arg0, %c0_i32 : i32, i32
  }
}

</mosaic_0001>

<llo_original>
// kernel: tpu_custom_call.1
$region0: #{tpu_custom_call.1}
  #allocation0 [shape = 'u32[]', space=smem, size = 0x4, offset = 0x4, fixed_abs, tag = 'smem constant byte address 0x4 - core index']
  #allocation1 [shape = 'u32[144,128]{1,0:T(1,128)}', space=vmem, size = 0x12000, scoped, tag = 'internal scratch']
  %s0 = inlined_call_operand.hbm [shape: f32[2,256], index: 0, kind: input, shape index: {}]
  %s1 = inlined_call_operand.hbm [shape: f32[256,128], index: 1, kind: input, shape index: {}]
  %s2 = inlined_call_operand.hbm [shape: f32[2,128], index: 2, kind: output, shape index: {}]
  %s3 = sld [smem:[#allocation0]]
  $region26: #{tpu_custom_call.1} parent=0
    _
  %s5 = ssub.s32 1, %s3
  %s6 = scalar_select 0, %s5, %s3
  $region1: #{tpu_custom_call.1} parent=0
    #allocation2 [shape = 'u8[8192]{0}', space=vmem, size = 0x2000, scoped, tag = 'input window, operand 0, single buffered']
    #allocation3 [shape = 's32[1]{0}', space=sflag, size = 0x4, scoped, tag = 'scoped memory for tpu_custom_call.1']
    #allocation4 [shape = 's32[1]{0}', space=sflag, size = 0x4, scoped, tag = 'scoped memory for tpu_custom_call.1']
    #allocation5 [shape = 'u8[131072]{0}', space=vmem, size = 0x20000, scoped, tag = 'input window, operand 1, single buffered']
    #allocation6 [shape = 's32[1]{0}', space=sflag, size = 0x4, scoped, tag = 'scoped memory for tpu_custom_call.1']
    #allocation7 [shape = 'u8[4096]{0}', space=vmem, size = 0x1000, scoped, tag = 'output window, operand 0, single buffered']
    %7 = vsyncpa [#allocation3], 0
    %8 = vsyncpa [#allocation6], 0
    %9 = vsyncpa [#allocation4], 0
    // Predicated region
    $region2: #{tpu_custom_call.1} parent=1 // pred_check
      _
    $region3: #{tpu_custom_call.1} parent=1 // pred_check_branch
      %11 = sbr.rel (0) target = $region5
    $region4: #{tpu_custom_call.1} parent=1 // pred_region
      %s13 = ssub.s32 256, 64
      %14 = vsyncadd [#allocation3], %s13
      %s15 = sshll.u32 [#allocation2], 4
      %s16 = int_to_ptr.vmem [resolvable:$true] %s15
      %21 = dma.hbm_to_vmem [thread:$0]  %s0, 64, %s16, [#allocation3], 64, 64, 4
    $region5: #{tpu_custom_call.1} parent=1 // pred_fallthru
      _
    // Predicated region
    $region6: #{tpu_custom_call.1} parent=1 // pred_check
      _
    $region7: #{tpu_custom_call.1} parent=1 // pred_check_branch
      %23 = sbr.rel (0) target = $region9
    $region8: #{tpu_custom_call.1} parent=1 // pred_region
      %s25 = ssub.s32 4096, 4096
      %26 = vsyncadd [#allocation6], %s25
      %s27 = sshll.u32 [#allocation5], 4
      %s28 = int_to_ptr.vmem [resolvable:$true] %s27
      %33 = dma.hbm_to_vmem [thread:$0]  %s1, 4096, %s28, [#allocation6], 128, 128, 8
    $region9: #{tpu_custom_call.1} parent=1 // pred_fallthru
      _
    // Predicated region
    $region10: #{tpu_custom_call.1} parent=1 // pred_check
      _
    $region11: #{tpu_custom_call.1} parent=1 // pred_check_branch
      %35 = sbr.rel (0) target = $region13
    $region12: #{tpu_custom_call.1} parent=1 // pred_region
      %36 = dma.done [#allocation3], 256
    $region13: #{tpu_custom_call.1} parent=1 // pred_fallthru
      _
    // Predicated region
    $region14: #{tpu_custom_call.1} parent=1 // pred_check
      _
    $region15: #{tpu_custom_call.1} parent=1 // pred_check_branch
      %38 = sbr.rel (0) target = $region17
    $region16: #{tpu_custom_call.1} parent=1 // pred_region
      %39 = dma.done [#allocation6], 4096
    $region17: #{tpu_custom_call.1} parent=1 // pred_fallthru
      _
    %v40 = vld [vmem:[#allocation2] sm:$0xf]
    %v41 = vld [vmem:[#allocation2 + $0x4] sm:$0xf]
    %v42 = vld [vmem:[#allocation2 + $0x8] sm:$0xf]
    %v43 = vld [vmem:[#allocation2 + $0xc] sm:$0xf]
    %v44 = vld [vmem:[#allocation5] sm:$0xff]
    %v45 = vld [vmem:[#allocation5 + $0x8] sm:$0xff]
    %v46 = vld [vmem:[#allocation5 + $0x10] sm:$0xff]
    %v47 = vld [vmem:[#allocation5 + $0x18] sm:$0xff]
    %v48 = vld [vmem:[#allocation5 + $0x20] sm:$0xff]
    %v49 = vld [vmem:[#allocation5 + $0x28] sm:$0xff]
    %v50 = vld [vmem:[#allocation5 + $0x30] sm:$0xff]
    %v51 = vld [vmem:[#allocation5 + $0x38] sm:$0xff]
    %v52 = vld [vmem:[#allocation5 + $0x40] sm:$0xff]
    %v53 = vld [vmem:[#allocation5 + $0x48] sm:$0xff]
    %v54 = vld [vmem:[#allocation5 + $0x50] sm:$0xff]
    %v55 = vld [vmem:[#allocation5 + $0x58] sm:$0xff]
    %v56 = vld [vmem:[#allocation5 + $0x60] sm:$0xff]
    %v57 = vld [vmem:[#allocation5 + $0x68] sm:$0xff]
    %v58 = vld [vmem:[#allocation5 + $0x70] sm:$0xff]
    %v59 = vld [vmem:[#allocation5 + $0x78] sm:$0xff]
    %v60 = vld [vmem:[#allocation5 + $0x80] sm:$0xff]
    %v61 = vld [vmem:[#allocation5 + $0x88] sm:$0xff]
    %v62 = vld [vmem:[#allocation5 + $0x90] sm:$0xff]
    %v63 = vld [vmem:[#allocation5 + $0x98] sm:$0xff]
    %v64 = vld [vmem:[#allocation5 + $0xa0] sm:$0xff]
    %v65 = vld [vmem:[#allocation5 + $0xa8] sm:$0xff]
    %v66 = vld [vmem:[#allocation5 + $0xb0] sm:$0xff]
    %v67 = vld [vmem:[#allocation5 + $0xb8] sm:$0xff]
    %v68 = vld [vmem:[#allocation5 + $0xc0] sm:$0xff]
    %v69 = vld [vmem:[#allocation5 + $0xc8] sm:$0xff]
    %v70 = vld [vmem:[#allocation5 + $0xd0] sm:$0xff]
    %v71 = vld [vmem:[#allocation5 + $0xd8] sm:$0xff]
    %v72 = vld [vmem:[#allocation5 + $0xe0] sm:$0xff]
    %v73 = vld [vmem:[#allocation5 + $0xe8] sm:$0xff]
    %v74 = vld [vmem:[#allocation5 + $0xf0] sm:$0xff]
    %v75 = vld [vmem:[#allocation5 + $0xf8] sm:$0xff]
    %v80 = vcombine.low %v40, %v41
    %v81 = vcombine.low %v42, %v43
    %v83 = vunpack.c.l.s4 1983009808
    %v84 = vunpack.c.0.s8 %v83
    %v85 = vlaneseq
    %v86 = vshrl.u32 %v85, 7
    %v87 = vsub.s32 %v84, %v86
    %v88 = vrot.slane %v80, %v87
    %v90 = vunpack.c.l.s4 1983009808
    %v91 = vunpack.c.0.s8 %v90
    %v92 = vlaneseq
    %v93 = vshrl.u32 %v92, 7
    %v94 = vsub.s32 %v91, %v93
    %v95 = vrot.slane %v81, %v94
    %v96 = vcombine.low %v88, %v95
    %v97 = vcombine.high %v88, %v95
    %100 = vmatprep.subr.mxu0 0.0
    %101 = vmatpush1.msra.mxu0 %v44
    %102 = vmatprep.subr.mxu0 0.0
    %103 = vmatpush1.msra.mxu0 %v45
    %104 = vmatprep.subr.mxu0 0.0
    %105 = vmatpush1.msra.mxu0 %v46
    %106 = vmatprep.subr.mxu0 0.0
    %107 = vmatpush1.msra.mxu0 %v47
    %108 = vmatprep.subr.mxu0 0.0
    %109 = vmatpush1.msra.mxu0 %v48
    %110 = vmatprep.subr.mxu0 0.0
    %111 = vmatpush1.msra.mxu0 %v49
    %112 = vmatprep.subr.mxu0 0.0
    %113 = vmatpush1.msra.mxu0 %v50
    %114 = vmatprep.subr.mxu0 0.0
    %115 = vmatpush1.msra.mxu0 %v51
    %116 = vmatprep.subr.mxu0 0.0
    %117 = vmatpush1.msra.mxu0 %v52
    %118 = vmatprep.subr.mxu0 0.0
    %119 = vmatpush1.msra.mxu0 %v53
    %120 = vmatprep.subr.mxu0 0.0
    %121 = vmatpush1.msra.mxu0 %v54
    %122 = vmatprep.subr.mxu0 0.0
    %123 = vmatpush1.msra.mxu0 %v55
    %124 = vmatprep.subr.mxu0 0.0
    %125 = vmatpush1.msra.mxu0 %v56
    %126 = vmatprep.subr.mxu0 0.0
    %127 = vmatpush1.msra.mxu0 %v57
    %128 = vmatprep.subr.mxu0 0.0
    %129 = vmatpush1.msra.mxu0 %v58
    %130 = vmatprep.subr.mxu0 0.0
    %131 = vmatpush1.msra.mxu0 %v59
    %132 = vmatprep.subr.mxu0 0.0
    %133 = vmatpush1.msra.mxu0 %v60
    %134 = vmatprep.subr.mxu0 0.0
    %135 = vmatpush1.msra.mxu0 %v61
    %136 = vmatprep.subr.mxu0 0.0
    %137 = vmatpush1.msra.mxu0 %v62
    %138 = vmatprep.subr.mxu0 0.0
    %139 = vmatpush1.msra.mxu0 %v63
    %140 = vmatprep.subr.mxu0 0.0
    %141 = vmatpush1.msra.mxu0 %v64
    %142 = vmatprep.subr.mxu0 0.0
    %143 = vmatpush1.msra.mxu0 %v65
    %144 = vmatprep.subr.mxu0 0.0
    %145 = vmatpush1.msra.mxu0 %v66
    %146 = vmatprep.subr.mxu0 0.0
    %147 = vmatpush1.msra.mxu0 %v67
    %148 = vmatprep.subr.mxu0 0.0
    %149 = vmatpush1.msra.mxu0 %v68
    %150 = vmatprep.subr.mxu0 0.0
    %151 = vmatpush1.msra.mxu0 %v69
    %152 = vmatprep.subr.mxu0 0.0
    %153 = vmatpush1.msra.mxu0 %v70
    %154 = vmatprep.subr.mxu0 0.0
    %155 = vmatpush1.msra.mxu0 %v71
    %156 = vmatprep.subr.mxu0 0.0
    %157 = vmatpush1.msra.mxu0 %v72
    %158 = vmatprep.subr.mxu0 0.0
    %159 = vmatpush1.msra.mxu0 %v73
    %160 = vmatprep.subr.mxu0 0.0
    %161 = vmatpush1.msra.mxu0 %v74
    %162 = vmatprep.subr.mxu0 0.0
    %163 = vmatpush1.msra.mxu0 %v75
    %164 = vmatprep.mubr.f32.mxu0 %v97
    %165 = vmatmul.mubr.f32.gmra.mrb[0].mxu0 %v96
    %v166 = vpop.f32.mrb[0].mxu0
    %v167 = vadd.f32 0.0, %v166
    %v168 = vpop.f32.mrb[0].mxu0
    %169 = vdwg.mxu0
    %170 = vst [vmem:[#allocation7] sm:$0xff] %v167
    // Predicated region
    $region18: #{tpu_custom_call.1} parent=1 // pred_check
      _
    $region19: #{tpu_custom_call.1} parent=1 // pred_check_branch
      %172 = sbr.rel (0) target = $region21
    $region20: #{tpu_custom_call.1} parent=1 // pred_region
      %s174 = ssub.s32 128, 32
      %175 = vsyncadd [#allocation4], %s174
      %s176 = sshll.u32 [#allocation7], 4
      %s177 = int_to_ptr.vmem [resolvable:$true] %s176
      %182 = dma.vmem_to_hbm [thread:$0]  %s177, 32, %s2, [#allocation4], 32, 32, 2
    $region21: #{tpu_custom_call.1} parent=1 // pred_fallthru
      _
    // Predicated region
    $region22: #{tpu_custom_call.1} parent=1 // pred_check
      _
    $region23: #{tpu_custom_call.1} parent=1 // pred_check_branch
      %184 = sbr.rel (0) target = $region25
    $region24: #{tpu_custom_call.1} parent=1 // pred_region
      %185 = dma.done [#allocation4], 128
    $region25: #{tpu_custom_call.1} parent=1 // pred_fallthru
      _
    %186 = vsyncpa [#allocation3], 1
    %187 = vsyncpa [#allocation6], 1
    %188 = vsyncpa [#allocation4], 1

</llo_original>
